<compile_context>
chip_gen: v7x
topology: tpu7x:2x2x1
jax: 0.10.0
libtpu: 0.0.40
codegen_flags: <defaults>
</compile_context>

<pallas_src>
import functools

import jax
import jax.numpy as jnp
from jax.experimental import pallas as pl
from jax.experimental.pallas import tpu as pltpu


def _detection_postproc_kernel(table_ref, packed_ref, mid_ref,
                               boxes_ref, labels_ref, *, num_verts, num_mids):
    V = num_verts

    # ---- boundingpoly_to_xyxy ------------------------------------------------
    # packed_ref rows (interleaved): [2v] = x_v, [2v+1] = y_v for v in [0, V),
    # rows [2V, 2V+1] = image (w, h); lanes = detections.
    lo = packed_ref[0:2, :]                      # (xmin, ymin) running slab
    hi = lo                                      # (xmax, ymax) running slab
    for v in range(1, V):
        slab = packed_ref[2 * v:2 * v + 2, :]
        lo = jnp.minimum(lo, slab)
        hi = jnp.maximum(hi, slab)

    wh = packed_ref[2 * V:2 * V + 2, :]          # (w, h) slab

    # Rows 0-1 = (xmin*w, ymin*h), rows 2-3 = (xmax*w, ymax*h): xyxy order.
    # Single unmasked full-tile store.
    boxes_ref[...] = jnp.concatenate([lo * wh, hi * wh], axis=0)

    # ---- mids.index(r.mid) ---------------------------------------------------
    # Reverse-order last-write-wins == first match in forward order; drops the
    # `& (labels < 0)` guard.  Table lives in SMEM (scalar prefetch).
    det = mid_ref[...]                                   # [1, BLK] int32
    labels = jnp.full(det.shape, -1, dtype=jnp.int32)
    for k in reversed(range(num_mids)):
        labels = jnp.where(det == table_ref[k], jnp.int32(k), labels)
    labels_ref[...] = labels


def detection_postproc(verts_x, verts_y, wh, det_mids, mid_table, scores):
    """Lane-dense Pallas wrapper.

    verts_x, verts_y : [N, V] normalized vertex coords
    wh               : [N, 2] image (w, h) per detection
    det_mids         : [N, 1] int32 MID codes
    mid_table        : [1, M] or [M] int32 MID table (self.mids)
    scores           : [N, 1] float32
    Returns boxes [N, 4] xyxy, labels [N, 1] int32 (-1 if MID unknown),
    scores [N, 1] (pure pass-through, never routed through the kernel).
    """
    n, V = verts_x.shape
    m = int(mid_table.size)

    # Detections live on the lane axis, padded to a multiple of 128.
    npad = ((max(n, 1) + 127) // 128) * 128
    # Lane-block size for the 1-D grid: big when batched, but must divide npad.
    blk = 512 if npad % 512 == 0 else 128
    grid = (npad // blk,)

    pad = npad - n

    # Interleaved pack: rows (x_0, y_0, x_1, y_1, ..., x_{V-1}, y_{V-1}, w, h).
    xy = jnp.stack([verts_x.T, verts_y.T], axis=1).reshape(2 * V, n)
    packed = jnp.concatenate([xy, wh.T], axis=0)              # [2V+2, N]
    packed = jnp.pad(packed, ((0, 0), (0, pad)))

    # Pad MIDs with a sentinel guaranteed absent from any real table.
    mids_row = det_mids.reshape(1, n).astype(jnp.int32)
    mids_row = jnp.pad(mids_row, ((0, 0), (0, pad)),
                       constant_values=jnp.iinfo(jnp.int32).min)

    table_1d = mid_table.reshape(-1).astype(jnp.int32)

    kernel = functools.partial(
        _detection_postproc_kernel, num_verts=V, num_mids=m)

    boxes_t, labels_row = pl.pallas_call(
        kernel,
        out_shape=(
            jax.ShapeDtypeStruct((4, npad), jnp.float32),     # boxes, transposed
            jax.ShapeDtypeStruct((1, npad), jnp.int32),       # labels
        ),
        grid_spec=pltpu.PrefetchScalarGridSpec(
            num_scalar_prefetch=1,                            # MID table -> SMEM
            grid=grid,
            in_specs=[
                pl.BlockSpec((2 * V + 2, blk), lambda i, tbl: (0, i)),
                pl.BlockSpec((1, blk), lambda i, tbl: (0, i)),
            ],
            out_specs=(
                pl.BlockSpec((4, blk), lambda i, tbl: (0, i)),
                pl.BlockSpec((1, blk), lambda i, tbl: (0, i)),
            ),
        ),
        compiler_params=pltpu.CompilerParams(
            dimension_semantics=("parallel",)),               # 2 TCs on v7x
    )(table_1d, packed, mids_row)

    boxes = boxes_t[:, :n].T                     # [N, 4] xyxy
    labels = labels_row[0, :n].reshape(n, 1)     # [N, 1] int32 (-1 = unknown MID)
    return boxes, labels, scores


if __name__ == "__main__":
    key = jax.random.PRNGKey(0)
    k_vx, k_vy, k_sc = jax.random.split(key, 3)

    N_DET = 8      # number of localized-object annotations
    V = 4          # vertices per BoundingPoly (normalized_vertices)
    M = 16         # number of known MIDs in self.mids

    # Normalized polygon vertices in [0, 1], as returned by the API.
    verts_x = jax.random.uniform(k_vx, (N_DET, V), dtype=jnp.float32)
    verts_y = jax.random.uniform(k_vy, (N_DET, V), dtype=jnp.float32)

    # Per-detection image size (w, h) -- all detections from one 640x480 image.
    wh = jnp.tile(jnp.array([[640.0, 480.0]], dtype=jnp.float32), (N_DET, 1))

    # Deterministic MID table (string MIDs encoded as int32 codes in-script).
    mid_table = (1000 + 7 * jnp.arange(M, dtype=jnp.int32)).reshape(1, M)

    # Detection MID codes: mostly present in the table, one unknown (-> label -1).
    det_idx = jnp.array([3, 0, 7, 12, 5, 9, 1, 15], dtype=jnp.int32)
    det_mids = (1000 + 7 * det_idx).reshape(N_DET, 1)
    det_mids = det_mids.at[4, 0].set(9999)   # MID not in our list

    scores = jax.random.uniform(k_sc, (N_DET, 1), dtype=jnp.float32)

    boxes, labels, out_scores = detection_postproc(
        verts_x, verts_y, wh, det_mids, mid_table, scores)
    jax.block_until_ready((boxes, labels, out_scores))

    # Reference check in plain JAX (mirrors result_to_detection math).
    ref_boxes = jnp.stack([
        jnp.min(verts_x, -1) * wh[:, 0],
        jnp.min(verts_y, -1) * wh[:, 1],
        jnp.max(verts_x, -1) * wh[:, 0],
        jnp.max(verts_y, -1) * wh[:, 1],
    ], axis=-1)
    eq = det_mids == mid_table
    ref_labels = jnp.where(eq.any(-1), jnp.argmax(eq, -1), -1).reshape(N_DET, 1)

    assert jnp.allclose(boxes, ref_boxes, atol=1e-5)
    assert (labels == ref_labels).all()
    assert jnp.allclose(out_scores, scores)
    print("KERNEL_OK")
</pallas_src>

<mosaic_0001>
module attributes {stable_mosaic.version = 11 : i64} {
  func.func @_detection_postproc_kernel(%arg0: i32, %arg1: memref<16xi32, #tpu.memory_space<smem>>, %arg2: memref<10x128xf32, #tpu.memory_space<vmem>>, %arg3: memref<1x128xi32, #tpu.memory_space<vmem>>, %arg4: memref<4x128xf32, #tpu.memory_space<vmem>>, %arg5: memref<1x128xi32, #tpu.memory_space<vmem>>) attributes {dimension_semantics = [#tpu.dimension_semantics<parallel>], iteration_bounds = array<i64: 1>, scalar_prefetch = 1 : i64, scratch_operands = 0 : i64, tpu.core_type = #tpu.core_type<tc>, window_params = [{transform_indices = @transform_0, window_bounds = array<i64: 10, 128>}, {transform_indices = @transform_1, window_bounds = array<i64: 1, 128>}, {transform_indices = @transform_2, window_bounds = array<i64: 4, 128>}, {transform_indices = @transform_3, window_bounds = array<i64: 1, 128>}]} {
    %c0 = arith.constant 0 : index
    %c0_0 = arith.constant 0 : index
    %0 = vector.load %arg2[%c0, %c0_0] : memref<10x128xf32, #tpu.memory_space<vmem>>, vector<2x128xf32>
    %c2 = arith.constant 2 : index
    %c0_1 = arith.constant 0 : index
    %1 = vector.load %arg2[%c2, %c0_1] : memref<10x128xf32, #tpu.memory_space<vmem>>, vector<2x128xf32>
    %2 = arith.minimumf %0, %1 : vector<2x128xf32>
    %3 = arith.maximumf %0, %1 : vector<2x128xf32>
    %c4 = arith.constant 4 : index
    %c0_2 = arith.constant 0 : index
    %4 = vector.load %arg2[%c4, %c0_2] : memref<10x128xf32, #tpu.memory_space<vmem>>, vector<2x128xf32>
    %5 = arith.minimumf %2, %4 : vector<2x128xf32>
    %6 = arith.maximumf %3, %4 : vector<2x128xf32>
    %c6 = arith.constant 6 : index
    %c0_3 = arith.constant 0 : index
    %7 = vector.load %arg2[%c6, %c0_3] : memref<10x128xf32, #tpu.memory_space<vmem>>, vector<2x128xf32>
    %8 = arith.minimumf %5, %7 : vector<2x128xf32>
    %9 = arith.maximumf %6, %7 : vector<2x128xf32>
    %c8 = arith.constant 8 : index
    %c0_4 = arith.constant 0 : index
    %10 = vector.load %arg2[%c8, %c0_4] : memref<10x128xf32, #tpu.memory_space<vmem>>, vector<2x128xf32>
    %11 = arith.mulf %8, %10 : vector<2x128xf32>
    %12 = arith.mulf %9, %10 : vector<2x128xf32>
    %13 = tpu.concatenate %11, %12 in 0 : vector<2x128xf32>, vector<2x128xf32> -> vector<4x128xf32>
    %c0_5 = arith.constant 0 : index
    %c0_6 = arith.constant 0 : index
    %14 = vector.load %arg4[%c0_5, %c0_6] : memref<4x128xf32, #tpu.memory_space<vmem>>, vector<4x128xf32>
    tpu.vector_store %arg4[%c0_5, %c0_6], %13 {strides = array<i32>} : memref<4x128xf32, #tpu.memory_space<vmem>>, vector<4x128xf32>,
    %c0_7 = arith.constant 0 : index
    %c0_8 = arith.constant 0 : index
    %15 = vector.load %arg3[%c0_7, %c0_8] : memref<1x128xi32, #tpu.memory_space<vmem>>, vector<1x128xi32>
    %c-1_i32 = arith.constant -1 : i32
    %16 = vector.broadcast %c-1_i32 : i32 to vector<1x128xi32>
    %c15 = arith.constant 15 : index
    %17 = memref.load %arg1[%c15] : memref<16xi32, #tpu.memory_space<smem>>
    %18 = vector.broadcast %17 : i32 to vector<1x128xi32>
    %19 = arith.cmpi eq, %15, %18 : vector<1x128xi32>
    %c15_i32 = arith.constant 15 : i32
    %20 = vector.broadcast %c15_i32 : i32 to vector<1x128xi32>
    %21 = arith.select %19, %20, %16 : vector<1x128xi1>, vector<1x128xi32>
    %c14 = arith.constant 14 : index
    %22 = memref.load %arg1[%c14] : memref<16xi32, #tpu.memory_space<smem>>
    %23 = vector.broadcast %22 : i32 to vector<1x128xi32>
    %24 = arith.cmpi eq, %15, %23 : vector<1x128xi32>
    %c14_i32 = arith.constant 14 : i32
    %25 = vector.broadcast %c14_i32 : i32 to vector<1x128xi32>
    %26 = arith.select %24, %25, %21 : vector<1x128xi1>, vector<1x128xi32>
    %c13 = arith.constant 13 : index
    %27 = memref.load %arg1[%c13] : memref<16xi32, #tpu.memory_space<smem>>
    %28 = vector.broadcast %27 : i32 to vector<1x128xi32>
    %29 = arith.cmpi eq, %15, %28 : vector<1x128xi32>
    %c13_i32 = arith.constant 13 : i32
    %30 = vector.broadcast %c13_i32 : i32 to vector<1x128xi32>
    %31 = arith.select %29, %30, %26 : vector<1x128xi1>, vector<1x128xi32>
    %c12 = arith.constant 12 : index
    %32 = memref.load %arg1[%c12] : memref<16xi32, #tpu.memory_space<smem>>
    %33 = vector.broadcast %32 : i32 to vector<1x128xi32>
    %34 = arith.cmpi eq, %15, %33 : vector<1x128xi32>
    %c12_i32 = arith.constant 12 : i32
    %35 = vector.broadcast %c12_i32 : i32 to vector<1x128xi32>
    %36 = arith.select %34, %35, %31 : vector<1x128xi1>, vector<1x128xi32>
    %c11 = arith.constant 11 : index
    %37 = memref.load %arg1[%c11] : memref<16xi32, #tpu.memory_space<smem>>
    %38 = vector.broadcast %37 : i32 to vector<1x128xi32>
    %39 = arith.cmpi eq, %15, %38 : vector<1x128xi32>
    %c11_i32 = arith.constant 11 : i32
    %40 = vector.broadcast %c11_i32 : i32 to vector<1x128xi32>
    %41 = arith.select %39, %40, %36 : vector<1x128xi1>, vector<1x128xi32>
    %c10 = arith.constant 10 : index
    %42 = memref.load %arg1[%c10] : memref<16xi32, #tpu.memory_space<smem>>
    %43 = vector.broadcast %42 : i32 to vector<1x128xi32>
    %44 = arith.cmpi eq, %15, %43 : vector<1x128xi32>
    %c10_i32 = arith.constant 10 : i32
    %45 = vector.broadcast %c10_i32 : i32 to vector<1x128xi32>
    %46 = arith.select %44, %45, %41 : vector<1x128xi1>, vector<1x128xi32>
    %c9 = arith.constant 9 : index
    %47 = memref.load %arg1[%c9] : memref<16xi32, #tpu.memory_space<smem>>
    %48 = vector.broadcast %47 : i32 to vector<1x128xi32>
    %49 = arith.cmpi eq, %15, %48 : vector<1x128xi32>
    %c9_i32 = arith.constant 9 : i32
    %50 = vector.broadcast %c9_i32 : i32 to vector<1x128xi32>
    %51 = arith.select %49, %50, %46 : vector<1x128xi1>, vector<1x128xi32>
    %c8_9 = arith.constant 8 : index
    %52 = memref.load %arg1[%c8_9] : memref<16xi32, #tpu.memory_space<smem>>
    %53 = vector.broadcast %52 : i32 to vector<1x128xi32>
    %54 = arith.cmpi eq, %15, %53 : vector<1x128xi32>
    %c8_i32 = arith.constant 8 : i32
    %55 = vector.broadcast %c8_i32 : i32 to vector<1x128xi32>
    %56 = arith.select %54, %55, %51 : vector<1x128xi1>, vector<1x128xi32>
    %c7 = arith.constant 7 : index
    %57 = memref.load %arg1[%c7] : memref<16xi32, #tpu.memory_space<smem>>
    %58 = vector.broadcast %57 : i32 to vector<1x128xi32>
    %59 = arith.cmpi eq, %15, %58 : vector<1x128xi32>
    %c7_i32 = arith.constant 7 : i32
    %60 = vector.broadcast %c7_i32 : i32 to vector<1x128xi32>
    %61 = arith.select %59, %60, %56 : vector<1x128xi1>, vector<1x128xi32>
    %c6_10 = arith.constant 6 : index
    %62 = memref.load %arg1[%c6_10] : memref<16xi32, #tpu.memory_space<smem>>
    %63 = vector.broadcast %62 : i32 to vector<1x128xi32>
    %64 = arith.cmpi eq, %15, %63 : vector<1x128xi32>
    %c6_i32 = arith.constant 6 : i32
    %65 = vector.broadcast %c6_i32 : i32 to vector<1x128xi32>
    %66 = arith.select %64, %65, %61 : vector<1x128xi1>, vector<1x128xi32>
    %c5 = arith.constant 5 : index
    %67 = memref.load %arg1[%c5] : memref<16xi32, #tpu.memory_space<smem>>
    %68 = vector.broadcast %67 : i32 to vector<1x128xi32>
    %69 = arith.cmpi eq, %15, %68 : vector<1x128xi32>
    %c5_i32 = arith.constant 5 : i32
    %70 = vector.broadcast %c5_i32 : i32 to vector<1x128xi32>
    %71 = arith.select %69, %70, %66 : vector<1x128xi1>, vector<1x128xi32>
    %c4_11 = arith.constant 4 : index
    %72 = memref.load %arg1[%c4_11] : memref<16xi32, #tpu.memory_space<smem>>
    %73 = vector.broadcast %72 : i32 to vector<1x128xi32>
    %74 = arith.cmpi eq, %15, %73 : vector<1x128xi32>
    %c4_i32 = arith.constant 4 : i32
    %75 = vector.broadcast %c4_i32 : i32 to vector<1x128xi32>
    %76 = arith.select %74, %75, %71 : vector<1x128xi1>, vector<1x128xi32>
    %c3 = arith.constant 3 : index
    %77 = memref.load %arg1[%c3] : memref<16xi32, #tpu.memory_space<smem>>
    %78 = vector.broadcast %77 : i32 to vector<1x128xi32>
    %79 = arith.cmpi eq, %15, %78 : vector<1x128xi32>
    %c3_i32 = arith.constant 3 : i32
    %80 = vector.broadcast %c3_i32 : i32 to vector<1x128xi32>
    %81 = arith.select %79, %80, %76 : vector<1x128xi1>, vector<1x128xi32>
    %c2_12 = arith.constant 2 : index
    %82 = memref.load %arg1[%c2_12] : memref<16xi32, #tpu.memory_space<smem>>
    %83 = vector.broadcast %82 : i32 to vector<1x128xi32>
    %84 = arith.cmpi eq, %15, %83 : vector<1x128xi32>
    %c2_i32 = arith.constant 2 : i32
    %85 = vector.broadcast %c2_i32 : i32 to vector<1x128xi32>
    %86 = arith.select %84, %85, %81 : vector<1x128xi1>, vector<1x128xi32>
    %c1 = arith.constant 1 : index
    %87 = memref.load %arg1[%c1] : memref<16xi32, #tpu.memory_space<smem>>
    %88 = vector.broadcast %87 : i32 to vector<1x128xi32>
    %89 = arith.cmpi eq, %15, %88 : vector<1x128xi32>
    %c1_i32 = arith.constant 1 : i32
    %90 = vector.broadcast %c1_i32 : i32 to vector<1x128xi32>
    %91 = arith.select %89, %90, %86 : vector<1x128xi1>, vector<1x128xi32>
    %c0_13 = arith.constant 0 : index
    %92 = memref.load %arg1[%c0_13] : memref<16xi32, #tpu.memory_space<smem>>
    %93 = vector.broadcast %92 : i32 to vector<1x128xi32>
    %94 = arith.cmpi eq, %15, %93 : vector<1x128xi32>
    %c0_i32 = arith.constant 0 : i32
    %95 = vector.broadcast %c0_i32 : i32 to vector<1x128xi32>
    %96 = arith.select %94, %95, %91 : vector<1x128xi1>, vector<1x128xi32>
    %c0_14 = arith.constant 0 : index
    %c0_15 = arith.constant 0 : index
    %97 = vector.load %arg5[%c0_14, %c0_15] : memref<1x128xi32, #tpu.memory_space<vmem>>, vector<1x128xi32>
    tpu.vector_store %arg5[%c0_14, %c0_15], %96 {strides = array<i32>} : memref<1x128xi32, #tpu.memory_space<vmem>>, vector<1x128xi32>,
    return
  }
  func.func @transform_0(%arg0: i32, %arg1: memref<16xi32, #tpu.memory_space<smem>>) -> (i32, i32) {
    %c0_i32 = arith.constant 0 : i32
    %c0_i32_0 = arith.constant 0 : i32
    return %c0_i32, %arg0 : i32, i32
  }
  func.func @transform_1(%arg0: i32, %arg1: memref<16xi32, #tpu.memory_space<smem>>) -> (i32, i32) {
    %c0_i32 = arith.constant 0 : i32
    %c0_i32_0 = arith.constant 0 : i32
    return %c0_i32, %arg0 : i32, i32
  }
  func.func @transform_2(%arg0: i32, %arg1: memref<16xi32, #tpu.memory_space<smem>>) -> (i32, i32) {
    %c0_i32 = arith.constant 0 : i32
    %c0_i32_0 = arith.constant 0 : i32
    return %c0_i32, %arg0 : i32, i32
  }
  func.func @transform_3(%arg0: i32, %arg1: memref<16xi32, #tpu.memory_space<smem>>) -> (i32, i32) {
    %c0_i32 = arith.constant 0 : i32
    %c0_i32_0 = arith.constant 0 : i32
    return %c0_i32, %arg0 : i32, i32
  }
}

</mosaic_0001>

<llo_original>
// kernel: tpu_custom_call.1
$region0: #{tpu_custom_call.1}
  #allocation0 [shape = 'u32[]', space=smem, size = 0x4, offset = 0x4, fixed_abs, tag = 'smem constant byte address 0x4 - core index']
  #allocation1 [shape = 'u32[144,128]{1,0:T(1,128)}', space=vmem, size = 0x12000, scoped, tag = 'internal scratch']
  #allocation2 [shape = 's32[1]{0}', space=sflag, size = 0x4, scoped, tag = 'scoped memory for tpu_custom_call.1']
  #allocation3 [shape = 'u8[512]{0}', space=smem, size = 0x200, scoped, tag = 'prefetched SMEM operand 0']
  %s0 = inlined_call_operand.hbm [shape: s32[16], index: 0, kind: input, shape index: {}]
  %s1 = inlined_call_operand.hbm [shape: f32[10,128], index: 1, kind: input, shape index: {}]
  %s2 = inlined_call_operand.vmem [shape: s32[1,128], index: 2, kind: input, shape index: {}]
  %s3 = inlined_call_operand.hbm [shape: f32[4,128], index: 3, kind: output, shape index: {0}]
  %s4 = inlined_call_operand.hbm [shape: s32[1,128], index: 4, kind: output, shape index: {1}]
  %5 = xla_tuple %s3, %s4
  %s6 = sld [smem:[#allocation0]]
  $region30: #{tpu_custom_call.1} parent=0
    _
  %s8 = ssub.s32 1, %s6
  %s9 = scalar_select 0, %s8, %s6
  %11 = dma.hbm_to_smem %s0, 16, [#allocation3], [#allocation2]
  %12 = dma.done [#allocation2], 16
  %13 = sfence
  $region1: #{tpu_custom_call.1} parent=0
    #allocation4 [shape = 'u8[8192]{0}', space=vmem, size = 0x2000, scoped, tag = 'input window, operand 1, single buffered']
    #allocation5 [shape = 's32[1]{0}', space=sflag, size = 0x4, scoped, tag = 'scoped memory for tpu_custom_call.1']
    #allocation6 [shape = 's32[1]{0}', space=sflag, size = 0x4, scoped, tag = 'scoped memory for tpu_custom_call.1']
    #allocation7 [shape = 'u8[2048]{0}', space=vmem, size = 0x800, scoped, tag = 'output window, operand 0, single buffered']
    #allocation8 [shape = 'u8[512]{0}', space=vmem, size = 0x400, scoped, tag = 'output window, operand 1, single buffered']
    #allocation9 [shape = 's32[1]{0}', space=sflag, size = 0x4, scoped, tag = 'scoped memory for tpu_custom_call.1']
    %14 = vsyncpa [#allocation5], 0
    %15 = vsyncpa [#allocation6], 0
    %16 = vsyncpa [#allocation9], 0
    // Predicated region
    $region2: #{tpu_custom_call.1} parent=1 // pred_check
      _
    $region3: #{tpu_custom_call.1} parent=1 // pred_check_branch
      %18 = sbr.rel (0) target = $region5
    $region4: #{tpu_custom_call.1} parent=1 // pred_region
      %s20 = ssub.s32 256, 256
      %21 = vsyncadd [#allocation5], %s20
      %s22 = sshll.u32 [#allocation4], 4
      %s23 = int_to_ptr.vmem [resolvable:$true] %s22
      %28 = dma.hbm_to_vmem [thread:$0]  %s1, 256, %s23, [#allocation5], 128, 128, 8
    $region5: #{tpu_custom_call.1} parent=1 // pred_fallthru
      _
    // Predicated region
    $region6: #{tpu_custom_call.1} parent=1 // pred_check
      _
    $region7: #{tpu_custom_call.1} parent=1 // pred_check_branch
      %30 = sbr.rel (0) target = $region9
    $region8: #{tpu_custom_call.1} parent=1 // pred_region
      _
    $region9: #{tpu_custom_call.1} parent=1 // pred_fallthru
      _
    // Predicated region
    $region10: #{tpu_custom_call.1} parent=1 // pred_check
      _
    $region11: #{tpu_custom_call.1} parent=1 // pred_check_branch
      %32 = sbr.rel (0) target = $region13
    $region12: #{tpu_custom_call.1} parent=1 // pred_region
      %33 = dma.done [#allocation5], 256
    $region13: #{tpu_custom_call.1} parent=1 // pred_fallthru
      _
    %v34 = vld [vmem:[#allocation4] sm:$0x3]
    %v35 = vld [vmem:[#allocation4 + $0x2] sm:$0x3]
    %v36 = vmin.f32 %v34, %v35
    %v37 = vmax.f32 %v34, %v35
    %v38 = vld [vmem:[#allocation4 + $0x4] sm:$0x3]
    %v39 = vmin.f32 %v36, %v38
    %v40 = vmax.f32 %v37, %v38
    %v41 = vld [vmem:[#allocation4 + $0x6] sm:$0x3]
    %v42 = vmin.f32 %v39, %v41
    %v43 = vmax.f32 %v40, %v41
    %v44 = vld [vmem:[#allocation4 + $0x8] sm:$0x3]
    %v45 = vmul.f32 %v42, %v44
    %v46 = vmul.f32 %v43, %v44
    %v48 = vrot.slane %v46, 6
    %vm50 = vcmask 1041408
    %v51 = vsel %vm50, %v45, %v48
    %52 = vst [vmem:[#allocation7] sm:$0xf] %v51
    %v53 = vld [vmem:[%s2] sm:$0x1]
    %s54 = sld [smem:[#allocation3 + $0xf]]
    %v55 = vstv %s54
    %vm56 = vcmp.eq.s32.totalorder %v53, %v55
    %v57 = vsel %vm56, 15, 4294967295
    %s58 = sld [smem:[#allocation3 + $0xe]]
    %v59 = vstv %s58
    %vm60 = vcmp.eq.s32.totalorder %v53, %v59
    %v61 = vsel %vm60, 14, %v57
    %s62 = sld [smem:[#allocation3 + $0xd]]
    %v63 = vstv %s62
    %vm64 = vcmp.eq.s32.totalorder %v53, %v63
    %v65 = vsel %vm64, 13, %v61
    %s66 = sld [smem:[#allocation3 + $0xc]]
    %v67 = vstv %s66
    %vm68 = vcmp.eq.s32.totalorder %v53, %v67
    %v69 = vsel %vm68, 12, %v65
    %s70 = sld [smem:[#allocation3 + $0xb]]
    %v71 = vstv %s70
    %vm72 = vcmp.eq.s32.totalorder %v53, %v71
    %v73 = vsel %vm72, 11, %v69
    %s74 = sld [smem:[#allocation3 + $0xa]]
    %v75 = vstv %s74
    %vm76 = vcmp.eq.s32.totalorder %v53, %v75
    %v77 = vsel %vm76, 10, %v73
    %s78 = sld [smem:[#allocation3 + $0x9]]
    %v79 = vstv %s78
    %vm80 = vcmp.eq.s32.totalorder %v53, %v79
    %v81 = vsel %vm80, 9, %v77
    %s82 = sld [smem:[#allocation3 + $0x8]]
    %v83 = vstv %s82
    %vm84 = vcmp.eq.s32.totalorder %v53, %v83
    %v85 = vsel %vm84, 8, %v81
    %s86 = sld [smem:[#allocation3 + $0x7]]
    %v87 = vstv %s86
    %vm88 = vcmp.eq.s32.totalorder %v53, %v87
    %v89 = vsel %vm88, 7, %v85
    %s90 = sld [smem:[#allocation3 + $0x6]]
    %v91 = vstv %s90
    %vm92 = vcmp.eq.s32.totalorder %v53, %v91
    %v93 = vsel %vm92, 6, %v89
    %s94 = sld [smem:[#allocation3 + $0x5]]
    %v95 = vstv %s94
    %vm96 = vcmp.eq.s32.totalorder %v53, %v95
    %v97 = vsel %vm96, 5, %v93
    %s98 = sld [smem:[#allocation3 + $0x4]]
    %v99 = vstv %s98
    %vm100 = vcmp.eq.s32.totalorder %v53, %v99
    %v101 = vsel %vm100, 4, %v97
    %s102 = sld [smem:[#allocation3 + $0x3]]
    %v103 = vstv %s102
    %vm104 = vcmp.eq.s32.totalorder %v53, %v103
    %v105 = vsel %vm104, 3, %v101
    %s106 = sld [smem:[#allocation3 + $0x2]]
    %v107 = vstv %s106
    %vm108 = vcmp.eq.s32.totalorder %v53, %v107
    %v109 = vsel %vm108, 2, %v105
    %s110 = sld [smem:[#allocation3 + $0x1]]
    %v111 = vstv %s110
    %vm112 = vcmp.eq.s32.totalorder %v53, %v111
    %v113 = vsel %vm112, 1, %v109
    %s114 = sld [smem:[#allocation3]]
    %v115 = vstv %s114
    %vm116 = vcmp.eq.s32.totalorder %v53, %v115
    %v117 = vsel %vm116, 0, %v113
    %118 = vst [vmem:[#allocation8] sm:$0x1] %v117
    // Predicated region
    $region14: #{tpu_custom_call.1} parent=1 // pred_check
      _
    $region15: #{tpu_custom_call.1} parent=1 // pred_check_branch
      %120 = sbr.rel (0) target = $region17
    $region16: #{tpu_custom_call.1} parent=1 // pred_region
      %s122 = ssub.s32 64, 64
      %123 = vsyncadd [#allocation6], %s122
      %s125 = sshll.u32 [#allocation7], 4
      %s126 = int_to_ptr.vmem [resolvable:$true] %s125
      %128 = dma.vmem_to_hbm [thread:$0]  %s126, 64, %s3, [#allocation6]
    $region17: #{tpu_custom_call.1} parent=1 // pred_fallthru
      _
    // Predicated region
    $region18: #{tpu_custom_call.1} parent=1 // pred_check
      _
    $region19: #{tpu_custom_call.1} parent=1 // pred_check_branch
      %130 = sbr.rel (0) target = $region21
    $region20: #{tpu_custom_call.1} parent=1 // pred_region
      %s132 = ssub.s32 16, 16
      %133 = vsyncadd [#allocation9], %s132
      %s135 = sshll.u32 [#allocation8], 4
      %s136 = int_to_ptr.vmem [resolvable:$true] %s135
      %138 = dma.vmem_to_hbm [thread:$0]  %s136, 16, %s4, [#allocation9]
    $region21: #{tpu_custom_call.1} parent=1 // pred_fallthru
      _
    // Predicated region
    $region22: #{tpu_custom_call.1} parent=1 // pred_check
      _
    $region23: #{tpu_custom_call.1} parent=1 // pred_check_branch
      %140 = sbr.rel (0) target = $region25
    $region24: #{tpu_custom_call.1} parent=1 // pred_region
      %141 = dma.done [#allocation6], 64
    $region25: #{tpu_custom_call.1} parent=1 // pred_fallthru
      _
    // Predicated region
    $region26: #{tpu_custom_call.1} parent=1 // pred_check
      _
    $region27: #{tpu_custom_call.1} parent=1 // pred_check_branch
      %143 = sbr.rel (0) target = $region29
    $region28: #{tpu_custom_call.1} parent=1 // pred_region
      %144 = dma.done [#allocation9], 16
    $region29: #{tpu_custom_call.1} parent=1 // pred_fallthru
      _
    %145 = vsyncpa [#allocation5], 1
    %146 = vsyncpa [#allocation6], 1
    %147 = vsyncpa [#allocation9], 1

</llo_original>
